<compile_context>
chip_gen: v7x
topology: tpu7x:2x2x1
jax: 0.10.0
libtpu: 0.0.40
codegen_flags: <defaults>
</compile_context>

<pallas_src>
import functools

import jax
import jax.numpy as jnp
from jax.experimental import pallas as pl
from jax.experimental.pallas import tpu as pltpu


# ---------------------------------------------------------------------------
# Kernels
# ---------------------------------------------------------------------------
def project_kernel(x_ref, w_ref, o_ref):
    """h = x @ W (lane-padded output, stored bf16 for the MXU aggregation)."""
    o_ref[...] = jnp.dot(x_ref[...], w_ref[...],
                         preferred_element_type=jnp.float32).astype(o_ref.dtype)


def _head_expand(heads, fout, hfp):
    """[H, HFP] 0/1 matrix mapping per-head scalars onto that head's fout lanes."""
    col = jax.lax.broadcasted_iota(jnp.int32, (heads, hfp), 1)
    row = jax.lax.broadcasted_iota(jnp.int32, (heads, hfp), 0)
    return (((col // fout) == row) & (col < heads * fout)).astype(jnp.float32)


def gat_attention_kernel(cnt_ref, adst_ref, asrc_ref, hsrc_ref, adj_ref, bias_ref,
                         out_ref, m_sc, l_sc, acc_sc,
                         *, heads, fout, apply_relu, apply_log_softmax):
    """Masked-softmax aggregation of one GATConv layer (online softmax over k).

    Grid: (target row blocks [parallel], source column blocks [arbitrary]).

    cnt_ref : SMEM [nI, nK] int32   nonzeros per adjacency tile (scalar prefetch)
    adst_ref: [TM, H]   f32         alpha_dst of the target rows
    asrc_ref: [H, TK]   f32         alpha_src of the source cols (pre-transposed)
    hsrc_ref: [TK, HFP] bf16        projected source features (lane-padded)
    adj_ref : [TM, TK]  bf16        adj[i, j] = 1 iff edge j -> i (incl. self-loop)
    bias_ref: [1, HFP]  f32
    out_ref : [TM, HFP] f32
    scratch : m_sc / l_sc [TM, H],  acc_sc [TM, HFP]   (f32)
    """
    i = pl.program_id(0)
    k = pl.program_id(1)
    nk = pl.num_programs(1)
    hf = heads * fout
    hfp = out_ref.shape[1]
    neg_inf = jnp.float32(-1e30)

    @pl.when(k == 0)
    def _init():
        m_sc[...] = jnp.full_like(m_sc, neg_inf)
        l_sc[...] = jnp.zeros_like(l_sc)
        acc_sc[...] = jnp.zeros_like(acc_sc)

    @pl.when(cnt_ref[i, k] > 0)          # skip adjacency tiles with no edges
    def _step():
        a_d = adst_ref[...]              # [TM, H]
        a_s = asrc_ref[...]              # [H, TK]
        hh = hsrc_ref[...]               # [TK, HFP] bf16
        mask = adj_ref[...] > 0          # [TM, TK], hoisted & reused per head
        m_prev = m_sc[...]               # [TM, H]

        m_cols, sum_cols, dot_cols = [], [], []
        for hd in range(heads):          # heads is static (8 or 1): unrolled
            # e[i, j] = LeakyReLU(alpha_dst[i] + alpha_src[j], 0.2), masked by adj
            s = a_d[:, hd:hd + 1] + a_s[hd:hd + 1, :]            # [TM, TK]
            s = jnp.maximum(s, 0.2 * s)                          # LeakyReLU: 1 VPU op
            s = jnp.where(mask, s, neg_inf)
            m_h = jnp.maximum(m_prev[:, hd:hd + 1],
                              jnp.max(s, axis=1, keepdims=True))  # [TM, 1]
            # second mask is load-bearing: rows fully masked in this tile keep p=0
            p = jnp.where(mask, jnp.exp(s - m_h), 0.0)
            m_cols.append(m_h)
            sum_cols.append(jnp.sum(p, axis=1, keepdims=True))
            if heads == 1:
                dot_cols.append(jnp.dot(p.astype(jnp.bfloat16), hh,
                                        preferred_element_type=jnp.float32))
            else:
                dot_cols.append(jnp.dot(p.astype(jnp.bfloat16),
                                        hh[:, hd * fout:(hd + 1) * fout],
                                        preferred_element_type=jnp.float32))

        if heads == 1:
            m_new, p_sum, upd = m_cols[0], sum_cols[0], dot_cols[0]
            alpha = jnp.exp(m_prev - m_new)                      # [TM, 1]
            alpha_exp = alpha                                    # broadcasts over HFP
        else:
            m_new = jnp.concatenate(m_cols, axis=1)              # [TM, H]
            p_sum = jnp.concatenate(sum_cols, axis=1)            # [TM, H]
            upd = jnp.concatenate(dot_cols, axis=1)              # [TM, HF]
            if hfp > hf:
                upd = jnp.concatenate(
                    [upd, jnp.zeros((upd.shape[0], hfp - hf), jnp.float32)], axis=1)
            alpha = jnp.exp(m_prev - m_new)                      # [TM, H]
            alpha_exp = jnp.dot(alpha, _head_expand(heads, fout, hfp),
                                preferred_element_type=jnp.float32)  # [TM, HFP]

        l_sc[...] = alpha * l_sc[...] + p_sum
        m_sc[...] = m_new
        acc_sc[...] = alpha_exp * acc_sc[...] + upd              # one dense FMA

    @pl.when(k == nk - 1)
    def _fin():
        inv_l = 1.0 / l_sc[...]          # exact reciprocal; runs once per row block
        if heads == 1:
            out = acc_sc[...] * inv_l
        else:
            inv_exp = jnp.dot(inv_l, _head_expand(heads, fout, hfp),
                              preferred_element_type=jnp.float32)
            out = acc_sc[...] * inv_exp
        out = out + bias_ref[...]
        if apply_relu:
            out = jnp.maximum(out, 0.0)
        if apply_log_softmax:
            if hf < hfp:                 # exclude padded class cols from reductions
                col = jax.lax.broadcasted_iota(jnp.int32, out.shape, 1)
                valid = col < hf
                sm = jnp.where(valid, out, neg_inf)
                m = jnp.max(sm, axis=1, keepdims=True)
                lse = m + jnp.log(jnp.sum(jnp.where(valid, jnp.exp(sm - m), 0.0),
                                          axis=1, keepdims=True))
                out = jnp.where(valid, out - lse, 0.0)
            else:
                m = jnp.max(out, axis=1, keepdims=True)
                lse = m + jnp.log(jnp.sum(jnp.exp(out - m), axis=1, keepdims=True))
                out = out - lse
        out_ref[...] = out               # single lane-dense full-tile store


# ---------------------------------------------------------------------------
# Wrappers
# ---------------------------------------------------------------------------
def _round_up(x, m):
    return ((x + m - 1) // m) * m


def choose_tiling(n):
    """Pad N and pick (row, source) tiles.

    * N is padded (zero rows/cols; the adjacency mask neutralizes them) so the
      grid never degenerates to a single full-N block.
    * tk (online-softmax reduction axis) is pushed large — fewer rescale passes
      and DMA launches; tm keeps >= 2 row blocks so the "parallel" axis can be
      sharded across TensorCores (v7x: 2 TCs/chip).
    * per-step working set at tm=256/tk=512 is ~1 MiB double-buffered — far below
      the scoped-VMEM default on every generation.
    """
    if n <= 512:
        n_pad = _round_up(n, 128)
        tk = n_pad
        tm = 128 if n_pad >= 256 else n_pad
    else:
        n_pad = _round_up(n, 512)
        tk = 512
        tm = 256
    return n_pad, tm, tk


def pad_matrix(m, rows, cols):
    r, c = m.shape
    return jnp.zeros((rows, cols), m.dtype).at[:r, :c].set(m)


def attention_vectors(w, a_src, a_dst, fin_pad):
    """Fold per-head attention projections into the input space:
    alpha_src = x @ (W @ a_src), alpha_dst = x @ (W @ a_dst)."""
    fin = w.shape[0]
    heads, fout = a_src.shape
    w3 = w.reshape(fin, heads, fout)
    w_src = jnp.einsum('ihf,hf->ih', w3, a_src)      # [fin, H]
    w_dst = jnp.einsum('ihf,hf->ih', w3, a_dst)
    if fin_pad > fin:
        pad = jnp.zeros((fin_pad - fin, heads), w.dtype)
        w_src = jnp.concatenate([w_src, pad], axis=0)
        w_dst = jnp.concatenate([w_dst, pad], axis=0)
    return w_src, w_dst


def project(x, w_pad, *, tm, out_dtype=jnp.bfloat16):
    n_pad, fin = x.shape
    hfp = w_pad.shape[1]
    return pl.pallas_call(
        project_kernel,
        out_shape=jax.ShapeDtypeStruct((n_pad, hfp), out_dtype),
        grid_spec=pltpu.PrefetchScalarGridSpec(
            num_scalar_prefetch=0,
            grid=(n_pad // tm,),
            in_specs=[pl.BlockSpec((tm, fin), lambda i: (i, 0)),
                      pl.BlockSpec((fin, hfp), lambda i: (0, 0))],
            out_specs=pl.BlockSpec((tm, hfp), lambda i: (i, 0))),
        compiler_params=pltpu.CompilerParams(dimension_semantics=("parallel",)),
    )(x, w_pad)


def gat_attention(counts, a_dst, a_src_t, hh, adj, bias, *, heads, fout, hfp,
                  apply_relu, apply_log_softmax, tm, tk):
    n_pad = hh.shape[0]
    kernel = functools.partial(gat_attention_kernel, heads=heads, fout=fout,
                               apply_relu=apply_relu,
                               apply_log_softmax=apply_log_softmax)
    return pl.pallas_call(
        kernel,
        out_shape=jax.ShapeDtypeStruct((n_pad, hfp), jnp.float32),
        grid_spec=pltpu.PrefetchScalarGridSpec(
            num_scalar_prefetch=1,                         # tile nonzero counts -> SMEM
            grid=(n_pad // tm, n_pad // tk),
            in_specs=[
                pl.BlockSpec((tm, heads), lambda i, k, c: (i, 0)),   # alpha_dst rows
                pl.BlockSpec((heads, tk), lambda i, k, c: (0, k)),   # alpha_src cols
                pl.BlockSpec((tk, hfp), lambda i, k, c: (k, 0)),     # src features bf16
                pl.BlockSpec((tm, tk), lambda i, k, c: (i, k)),      # adjacency tile
                pl.BlockSpec((1, hfp), lambda i, k, c: (0, 0)),      # bias
            ],
            out_specs=pl.BlockSpec((tm, hfp), lambda i, k, c: (i, 0)),
            scratch_shapes=[pltpu.VMEM((tm, heads), jnp.float32),    # running max
                            pltpu.VMEM((tm, heads), jnp.float32),    # running denom
                            pltpu.VMEM((tm, hfp), jnp.float32)]),    # accumulator slab
        compiler_params=pltpu.CompilerParams(
            dimension_semantics=("parallel", "arbitrary")),
    )(counts, a_dst, a_src_t, hh, adj, bias)


def build_dense_adj(edge_index, n, n_pad):
    """adj[i, j] = 1 iff edge j -> i, plus self-loops (GATConv add_self_loops=True).
    Self-loops are also added to padded rows so all rows stay finite; padded rows
    are sliced off outside.  Stored bf16 (exact 0/1) to halve HBM/VMEM traffic."""
    src, dst = edge_index[0], edge_index[1]
    adj = jnp.zeros((n_pad, n_pad), jnp.float32)
    adj = adj.at[dst, src].set(1.0)
    idx = jnp.arange(n_pad)
    adj = adj.at[idx, idx].set(1.0)
    return adj.astype(jnp.bfloat16)


def block_counts(adj, tm, tk):
    """Per-(row-block, col-block) nonzero counts; drives pl.when tile skipping."""
    n_pad = adj.shape[0]
    ni, nk = n_pad // tm, n_pad // tk
    return (adj > 0).reshape(ni, tm, nk, tk).sum(axis=(1, 3)).astype(jnp.int32)


def init_params(key, num_node_features, num_classes, heads=8, hidden=8):
    ks = jax.random.split(key, 8)

    def glorot(k, shape):
        fan_in, fan_out = shape[0], shape[-1]
        scale = jnp.sqrt(6.0 / (fan_in + fan_out))
        return jax.random.uniform(k, shape, jnp.float32, -scale, scale)

    return {
        # conv1: GATConv(num_node_features, 8, heads=8)
        "w1": glorot(ks[0], (num_node_features, heads * hidden)),
        "asrc1": glorot(ks[1], (heads, hidden)),
        "adst1": glorot(ks[2], (heads, hidden)),
        "b1": jnp.zeros((1, heads * hidden), jnp.float32),
        # conv2: GATConv(8*heads, num_classes)  (heads=1, concat default)
        "w2": glorot(ks[3], (heads * hidden, num_classes)),
        "asrc2": glorot(ks[4], (1, num_classes)),
        "adst2": glorot(ks[5], (1, num_classes)),
        "b2": jnp.zeros((1, num_classes), jnp.float32),
    }


def gat_forward(params, x, edge_index, *, heads=8, hidden=8, num_classes=4):
    n, fin = x.shape
    n_pad, tm, tk = choose_tiling(n)

    x_pad = jnp.zeros((n_pad, fin), jnp.float32).at[:n].set(x)
    adj = build_dense_adj(edge_index, n, n_pad)
    counts = block_counts(adj, tm, tk)

    # ---- layer 1: GATConv(F, 8, heads=8) + fused ReLU (dropout = identity) ----
    hf1 = heads * hidden
    hfp1 = _round_up(hf1, 128)
    w1p = pad_matrix(params["w1"], fin, hfp1)
    hh1 = project(x_pad, w1p, tm=tm)                            # bf16 [N_pad, 128]
    ws1, wd1 = attention_vectors(params["w1"], params["asrc1"], params["adst1"], fin)
    a_src1_t = jnp.transpose(x_pad @ ws1)                       # [H, N_pad]
    a_dst1 = x_pad @ wd1                                        # [N_pad, H]
    b1p = pad_matrix(params["b1"], 1, hfp1)
    h1 = gat_attention(counts, a_dst1, a_src1_t, hh1, adj, b1p,
                       heads=heads, fout=hidden, hfp=hfp1,
                       apply_relu=True, apply_log_softmax=False,
                       tm=tm, tk=tk)                            # f32 [N_pad, 128]

    # ---- layer 2: GATConv(8*heads, C) + fused masked log_softmax(dim=1) ----
    hf2 = num_classes
    hfp2 = _round_up(hf2, 128)
    w2p = pad_matrix(params["w2"], hfp1, hfp2)
    hh2 = project(h1, w2p, tm=tm)                               # bf16 [N_pad, 128]
    ws2, wd2 = attention_vectors(params["w2"], params["asrc2"], params["adst2"], hfp1)
    a_src2_t = jnp.transpose(h1 @ ws2)                          # [1, N_pad]
    a_dst2 = h1 @ wd2                                           # [N_pad, 1]
    b2p = pad_matrix(params["b2"], 1, hfp2)
    out = gat_attention(counts, a_dst2, a_src2_t, hh2, adj, b2p,
                        heads=1, fout=num_classes, hfp=hfp2,
                        apply_relu=False, apply_log_softmax=True,
                        tm=tm, tk=tk)                           # f32 [N_pad, 128]
    return out[:n, :num_classes]


# ---------------------------------------------------------------------------
# Pure-JAX reference (dense GATConv semantics) for validation
# ---------------------------------------------------------------------------
def ref_forward(params, x, edge_index, *, heads=8, hidden=8, num_classes=4):
    n = x.shape[0]
    adj = jnp.zeros((n, n), bool).at[edge_index[1], edge_index[0]].set(True)
    adj = adj.at[jnp.arange(n), jnp.arange(n)].set(True)

    def conv(xi, w, a_s, a_d, b):
        nh, nf = a_s.shape
        h = (xi @ w).reshape(n, nh, nf)
        e = (jnp.einsum('ihf,hf->ih', h, a_d)[:, None, :]
             + jnp.einsum('jhf,hf->jh', h, a_s)[None, :, :])
        e = jnp.where(e > 0, e, 0.2 * e)
        e = jnp.where(adj[:, :, None], e, -1e30)
        a = jax.nn.softmax(e, axis=1)
        return jnp.einsum('ijh,jhf->ihf', a, h).reshape(n, nh * nf) + b

    h = jnp.maximum(conv(x, params["w1"], params["asrc1"], params["adst1"],
                         params["b1"]), 0.0)
    o = conv(h, params["w2"], params["asrc2"], params["adst2"], params["b2"])
    return jax.nn.log_softmax(o, axis=1)


if __name__ == "__main__":
    key = jax.random.PRNGKey(0)
    k_param, k_x = jax.random.split(key)

    NUM_NODES = 256          # exercises a 2x1 (row-block x source-block) grid
    NUM_NODE_FEATURES = 16
    NUM_CLASSES = 4

    x = jax.random.normal(k_x, (NUM_NODES, NUM_NODE_FEATURES), jnp.float32)

    # deterministic bidirectional ring graph, edge_index shape [2, 2*N]
    idx = jnp.arange(NUM_NODES)
    nxt = (idx + 1) % NUM_NODES
    edge_index = jnp.stack([jnp.concatenate([idx, nxt]),
                            jnp.concatenate([nxt, idx])]).astype(jnp.int32)

    params = init_params(k_param, NUM_NODE_FEATURES, NUM_CLASSES)

    out = gat_forward(params, x, edge_index, heads=8, hidden=8,
                      num_classes=NUM_CLASSES)
    out = jax.block_until_ready(out)

    assert out.shape == (NUM_NODES, NUM_CLASSES)
    assert bool(jnp.all(jnp.isfinite(out)))
    # rows of log_softmax must exponentiate-sum to 1
    assert jnp.allclose(jnp.sum(jnp.exp(out), axis=1), 1.0, atol=1e-4)
    # match the dense pure-JAX GATConv reference (bf16 aggregation tolerance)
    ref = ref_forward(params, x, edge_index, heads=8, hidden=8,
                      num_classes=NUM_CLASSES)
    assert jnp.allclose(out, ref, atol=1e-1), float(jnp.max(jnp.abs(out - ref)))
    print("KERNEL_OK")
</pallas_src>

<mosaic_0001>
module attributes {stable_mosaic.version = 11 : i64} {
  func.func @project_kernel(%arg0: i32, %arg1: memref<128x16xf32, #tpu.memory_space<vmem>>, %arg2: memref<16x128xf32, #tpu.memory_space<vmem>>, %arg3: memref<128x128xbf16, #tpu.memory_space<vmem>>) attributes {dimension_semantics = [#tpu.dimension_semantics<parallel>], iteration_bounds = array<i64: 2>, scalar_prefetch = 0 : i64, scratch_operands = 0 : i64, tpu.core_type = #tpu.core_type<tc>, window_params = [{transform_indices = @transform_0, window_bounds = array<i64: 128, 16>}, {pipeline_mode = #tpu.pipeline_mode<synchronous>, transform_indices = @transform_1, window_bounds = array<i64: 16, 128>}, {transform_indices = @transform_2, window_bounds = array<i64: 128, 128>}]} {
    %c0 = arith.constant 0 : index
    %c0_0 = arith.constant 0 : index
    %0 = vector.load %arg1[%c0, %c0_0] : memref<128x16xf32, #tpu.memory_space<vmem>>, vector<128x16xf32>
    %c0_1 = arith.constant 0 : index
    %c0_2 = arith.constant 0 : index
    %1 = vector.load %arg2[%c0_1, %c0_2] : memref<16x128xf32, #tpu.memory_space<vmem>>, vector<16x128xf32>
    %cst = arith.constant dense<0.000000e+00> : vector<128x128xf32>
    %2 = tpu.matmul %0, %1, %cst {dimension_numbers = #tpu.dot_dimension_numbers<[1], [0], [0], [1], [0, 0, 1, 1], [], []>} : vector<128x16xf32>, vector<16x128xf32>, vector<128x128xf32> -> vector<128x128xf32>
    %3 = arith.truncf %2 : vector<128x128xf32> to vector<128x128xbf16>
    %c0_3 = arith.constant 0 : index
    %c0_4 = arith.constant 0 : index
    %4 = vector.load %arg3[%c0_3, %c0_4] : memref<128x128xbf16, #tpu.memory_space<vmem>>, vector<128x128xbf16>
    tpu.vector_store %arg3[%c0_3, %c0_4], %3 {strides = array<i32>} : memref<128x128xbf16, #tpu.memory_space<vmem>>, vector<128x128xbf16>,
    return
  }
  func.func @transform_0(%arg0: i32) -> (i32, i32) {
    %c0_i32 = arith.constant 0 : i32
    %c0_i32_0 = arith.constant 0 : i32
    return %arg0, %c0_i32 : i32, i32
  }
  func.func @transform_1(%arg0: i32) -> (i32, i32) {
    %c0_i32 = arith.constant 0 : i32
    %c0_i32_0 = arith.constant 0 : i32
    %c0_i32_1 = arith.constant 0 : i32
    return %c0_i32, %c0_i32_0 : i32, i32
  }
  func.func @transform_2(%arg0: i32) -> (i32, i32) {
    %c0_i32 = arith.constant 0 : i32
    %c0_i32_0 = arith.constant 0 : i32
    return %arg0, %c0_i32 : i32, i32
  }
}

</mosaic_0001>

<llo_original>
// kernel: tpu_custom_call.1
$region0: #{tpu_custom_call.1}
  #allocation0 [shape = 'u32[]', space=smem, size = 0x4, offset = 0x4, fixed_abs, tag = 'smem constant byte address 0x4 - core index']
  #allocation1 [shape = 'u32[144,128]{1,0:T(1,128)}', space=vmem, size = 0x12000, scoped, tag = 'internal scratch']
  %s0 = inlined_call_operand.vmem [shape: f32[256,16], index: 0, kind: input, shape index: {}]
  %s1 = inlined_call_operand.vmem [shape: f32[16,128], index: 1, kind: input, shape index: {}]
  %s2 = inlined_call_operand.hbm [shape: bf16[256,128], index: 2, kind: output, shape index: {}]
  %s3 = sld [smem:[#allocation0]]
  $region41: #{tpu_custom_call.1} parent=0
    _
  %s5 = ssub.s32 1, %s3
  %s6 = scalar_select 0, %s5, %s3
  $region1: #{tpu_custom_call.1} parent=0
    #allocation2 [shape = 'u8[65536]{0}', space=vmem, size = 0x10000, scoped, tag = 'output window, operand 0']
    #allocation3 [shape = 's32[2]{0}', space=sflag, size = 0x8, scoped, tag = 'scoped memory for tpu_custom_call.1']
    %7 = vsyncpa [#allocation3], 0
    %s8 = scalar_lea.sflag [#allocation3], 1
    %9 = vsyncpa %s8, 0
    loop: start=0, step=1, limit=4
    $region2: #{tpu_custom_call.1} parent=1 // loop_pre_header
      _
    $region3: #{tpu_custom_call.1} parent=1 // loop_header
      %s11 = sphi 0, %s15
      %p12 = scmp.ge.s32.totalorder %s11, 4
      %s21 = sphi 0, %s23
      %s24 = sphi 0, %s21
      %s25 = sphi 0, %s24
      %s41 = sphi 0, %s25
      %s45 = sphi 0, %s45
      %s47 = sphi 0, %s45
      %s48 = sphi 0, %s47
      %s62 = sphi 0, %s48
      %s68 = sphi 0, %s70
      %s71 = sphi 0, %s68
      %s72 = sphi 0, %s71
      %s88 = sphi 0, %s72
    $region4: #{tpu_custom_call.1} parent=1 // loop_header_branch
      %14 = sbr.rel (%p12) target = $region8
    $region5: #{tpu_custom_call.1} parent=1 // loop_body
      %s16 = ssub.s32 %s11, 1
      %s17 = ssub.s32 %s11, 2
      %s18 = sadd.s32 %s11, 1
      %s19 = ssub.s32 %s11, %s18
      %p20 = scmp.eq.s32.totalorder %s19, 0
      %s22 = sadd.s32 %s21, 1
      %s23 = scalar_select %p20, %s21, %s22
      %p26 = pneg %p20
      %p27 = scmp.eq.s32.totalorder %s11, 1
      %p28 = por %p26, %p27
      %p29 = scmp.ne.s32.totalorder %s21, %s24
      %p30 = scmp.eq.s32.totalorder %s11, 0
      %p31 = por %p29, %p30
      %p32 = scmp.ne.s32.totalorder %s21, %s24
      %p33 = scmp.eq.s32.totalorder %s16, 1
      %p34 = por %p32, %p33
      %p35 = scmp.ne.s32.totalorder %s24, %s25
      %p36 = scmp.eq.s32.totalorder %s16, 0
      %p37 = por %p35, %p36
      %p38 = scmp.ne.s32.totalorder %s24, %s25
      %p39 = scmp.eq.s32.totalorder %s17, 1
      %p40 = por %p38, %p39
      %p42 = scmp.ne.s32.totalorder %s25, %s41
      %p43 = scmp.eq.s32.totalorder %s17, 0
      %p44 = por %p42, %p43
      %s46 = sadd.s32 %s45, 1
      %p49 = scmp.eq.s32.totalorder %s11, 1
      %p50 = scmp.ne.s32.totalorder %s45, %s47
      %p51 = scmp.eq.s32.totalorder %s11, 0
      %p52 = por %p50, %p51
      %p53 = scmp.ne.s32.totalorder %s45, %s47
      %p54 = scmp.eq.s32.totalorder %s16, 1
      %p55 = por %p53, %p54
      %p56 = scmp.ne.s32.totalorder %s47, %s48
      %p57 = scmp.eq.s32.totalorder %s16, 0
      %p58 = por %p56, %p57
      %p59 = scmp.ne.s32.totalorder %s47, %s48
      %p60 = scmp.eq.s32.totalorder %s17, 1
      %p61 = por %p59, %p60
      %p63 = scmp.ne.s32.totalorder %s48, %s62
      %p64 = scmp.eq.s32.totalorder %s17, 0
      %p65 = por %p63, %p64
      %s66 = ssub.s32 %s11, %s18
      %p67 = scmp.eq.s32.totalorder %s66, 0
      %s69 = sadd.s32 %s68, 1
      %s70 = scalar_select %p67, %s68, %s69
      %p73 = pneg %p67
      %p74 = scmp.eq.s32.totalorder %s11, 1
      %p75 = por %p73, %p74
      %p76 = scmp.ne.s32.totalorder %s68, %s71
      %p77 = scmp.eq.s32.totalorder %s11, 0
      %p78 = por %p76, %p77
      %p79 = scmp.ne.s32.totalorder %s68, %s71
      %p80 = scmp.eq.s32.totalorder %s16, 1
      %p81 = por %p79, %p80
      %p82 = scmp.ne.s32.totalorder %s71, %s72
      %p83 = scmp.eq.s32.totalorder %s16, 0
      %p84 = por %p82, %p83
      %p85 = scmp.ne.s32.totalorder %s71, %s72
      %p86 = scmp.eq.s32.totalorder %s17, 1
      %p87 = por %p85, %p86
      %p89 = scmp.ne.s32.totalorder %s72, %s88
      %p90 = scmp.eq.s32.totalorder %s17, 0
      %p91 = por %p89, %p90
      %p92 = scmp.le.s32.totalorder 1, %s11
      %p93 = scmp.lt.s32.totalorder %s11, 3
      %p94 = pnand %p92, %p93
      %p95 = pneg %p94
      // Predicated region
      $region9: #{tpu_custom_call.1} parent=5 // pred_check
        _
      $region10: #{tpu_custom_call.1} parent=5 // pred_check_branch
        %97 = sbr.rel (%p94) target = $region12
      $region11: #{tpu_custom_call.1} parent=5 // pred_region
        %s98 = ssub.s32 %s11, 1
        // Predicated region
        $region13: #{tpu_custom_call.1} parent=11 // pred_check
          %p99 = pneg %p58
        $region14: #{tpu_custom_call.1} parent=11 // pred_check_branch
          %101 = sbr.rel (%p99) target = $region16
        $region15: #{tpu_custom_call.1} parent=11 // pred_region
          _
        $region16: #{tpu_custom_call.1} parent=11 // pred_fallthru
          _
      $region12: #{tpu_custom_call.1} parent=5 // pred_fallthru
        _
      %p102 = scmp.lt.s32.totalorder %s11, 2
      // Predicated region
      $region17: #{tpu_custom_call.1} parent=5 // pred_check
        %p103 = pneg %p102
      $region18: #{tpu_custom_call.1} parent=5 // pred_check_branch
        %105 = sbr.rel (%p103) target = $region20
      $region19: #{tpu_custom_call.1} parent=5 // pred_region
        // Predicated region
        $region21: #{tpu_custom_call.1} parent=19 // pred_check
          %p106 = pneg %p31
        $region22: #{tpu_custom_call.1} parent=19 // pred_check_branch
          %108 = sbr.rel (%p106) target = $region24
        $region23: #{tpu_custom_call.1} parent=19 // pred_region
          %s109 = smul.u32 16, %s11
          %p110 = scmp.lt.s32.totalorder %s109, 31
          %s111 = scalar_select %p110, %s109, 31
          %s112 = smul.addr %s111, 8
          %s113 = scalar_lea.vmem %s0, %s112
          %s114 = smul.u32 16, %s11
        $region24: #{tpu_custom_call.1} parent=19 // pred_fallthru
          _
      $region20: #{tpu_custom_call.1} parent=5 // pred_fallthru
        _
      %p115 = scmp.le.s32.totalorder 1, %s11
      %p116 = scmp.lt.s32.totalorder %s11, 3
      %p117 = pnand %p115, %p116
      %p118 = pneg %p117
      // Predicated region
      $region25: #{tpu_custom_call.1} parent=5 // pred_check
        _
      $region26: #{tpu_custom_call.1} parent=5 // pred_check_branch
        %120 = sbr.rel (%p117) target = $region28
      $region27: #{tpu_custom_call.1} parent=5 // pred_region
        %s121 = ssub.s32 %s11, 1
        %s122 = smul.u32 16, %s16
        %p123 = scmp.lt.s32.totalorder %s122, 31
        %s124 = scalar_select %p123, %s122, 31
        %s125 = smul.addr %s124, 8
        %s126 = scalar_lea.vmem %s0, %s125
        %p127 = pneg %p37
        %p128 = pneg %p34
        %p129 = pneg %p58
        %p130 = pneg %p55
        %p131 = pneg %p84
        %p132 = pneg %p81
        %s133 = sand.u32 %s71, 1
        %s134 = scalar_lea.sflag [#allocation3], %s133
        %s135 = sand.u32 %s71, 1
        %s136 = smul.addr %s135, 64
        %s137 = scalar_lea.vmem [#allocation2], %s136
        %s138 = smul.u32 16, %s16
        %p139 = scmp.lt.s32.totalorder %s138, 31
        %s140 = scalar_select %p139, %s138, 31
        %s141 = smul.addr %s140, 8
        %s142 = scalar_lea.vmem %s0, %s141
        %s143 = smul.u32 16, %s16
        %s144 = smul.u32 16, %s16
        %v145 = vld [vmem:[%s142] sm:$0xff]
        %v146 = vld [vmem:[%s142 + $0x8] sm:$0xff]
        %v147 = vld [vmem:[%s142 + $0x10] sm:$0xff]
        %v148 = vld [vmem:[%s142 + $0x18] sm:$0xff]
        %v149 = vld [vmem:[%s142 + $0x20] sm:$0xff]
        %v150 = vld [vmem:[%s142 + $0x28] sm:$0xff]
        %v151 = vld [vmem:[%s142 + $0x30] sm:$0xff]
        %v152 = vld [vmem:[%s142 + $0x38] sm:$0xff]
        %v153 = vld [vmem:[%s142 + $0x40] sm:$0xff]
        %v154 = vld [vmem:[%s142 + $0x48] sm:$0xff]
        %v155 = vld [vmem:[%s142 + $0x50] sm:$0xff]
        %v156 = vld [vmem:[%s142 + $0x58] sm:$0xff]
        %v157 = vld [vmem:[%s142 + $0x60] sm:$0xff]
        %v158 = vld [vmem:[%s142 + $0x68] sm:$0xff]
        %v159 = vld [vmem:[%s142 + $0x70] sm:$0xff]
        %v160 = vld [vmem:[%s142 + $0x78] sm:$0xff]
        %v161 = vld [vmem:[%s1] sm:$0xff]
        %v162 = vld [vmem:[%s1 + $0x8] sm:$0xff]
        %vm163 = vcmask 130048
        %v165 = vsel %vm163, %v145, 0
        %v168 = vsel %vm163, %v146, 0
        %v171 = vsel %vm163, %v147, 0
        %v174 = vsel %vm163, %v148, 0
        %v177 = vsel %vm163, %v149, 0
        %v180 = vsel %vm163, %v150, 0
        %v183 = vsel %vm163, %v151, 0
        %v186 = vsel %vm163, %v152, 0
        %v189 = vsel %vm163, %v153, 0
        %v192 = vsel %vm163, %v154, 0
        %v195 = vsel %vm163, %v155, 0
        %v198 = vsel %vm163, %v156, 0
        %v201 = vsel %vm163, %v157, 0
        %v204 = vsel %vm163, %v158, 0
        %v207 = vsel %vm163, %v159, 0
        %v210 = vsel %vm163, %v160, 0
        %212 = vmatprep.subr.mxu0 0.0
        %213 = vmatpush1.msra.mxu0 %v161
        %214 = vmatprep.subr.mxu0 0.0
        %215 = vmatpush1.msra.mxu0 %v162
        %216 = vmatprep.subr.mxu0 0.0
        %217 = vmatpush1.msra.mxu0 0.0
        %218 = vmatprep.subr.mxu0 0.0
        %219 = vmatpush1.msra.mxu0 0.0
        %220 = vmatprep.subr.mxu0 0.0
        %221 = vmatpush1.msra.mxu0 0.0
        %222 = vmatprep.subr.mxu0 0.0
        %223 = vmatpush1.msra.mxu0 0.0
        %224 = vmatprep.subr.mxu0 0.0
        %225 = vmatpush1.msra.mxu0 0.0
        %226 = vmatprep.subr.mxu0 0.0
        %227 = vmatpush1.msra.mxu0 0.0
        %228 = vmatprep.subr.mxu0 0.0
        %229 = vmatpush1.msra.mxu0 0.0
        %230 = vmatprep.subr.mxu0 0.0
        %231 = vmatpush1.msra.mxu0 0.0
        %232 = vmatprep.subr.mxu0 0.0
        %233 = vmatpush1.msra.mxu0 0.0
        %234 = vmatprep.subr.mxu0 0.0
        %235 = vmatpush1.msra.mxu0 0.0
        %236 = vmatprep.subr.mxu0 0.0
        %237 = vmatpush1.msra.mxu0 0.0
        %238 = vmatprep.subr.mxu0 0.0
        %239 = vmatpush1.msra.mxu0 0.0
        %240 = vmatprep.subr.mxu0 0.0
        %241 = vmatpush1.msra.mxu0 0.0
        %242 = vmatprep.subr.mxu0 0.0
        %243 = vmatpush1.msra.mxu0 0.0
        %244 = vmatprep.subr.mxu0 0.0
        %245 = vmatpush1.msra.mxu0 0.0
        %246 = vmatprep.subr.mxu0 0.0
        %247 = vmatpush1.msra.mxu0 0.0
        %248 = vmatprep.subr.mxu0 0.0
        %249 = vmatpush1.msra.mxu0 0.0
        %250 = vmatprep.subr.mxu0 0.0
        %251 = vmatpush1.msra.mxu0 0.0
        %252 = vmatprep.subr.mxu0 0.0
        %253 = vmatpush1.msra.mxu0 0.0
        %254 = vmatprep.subr.mxu0 0.0
        %255 = vmatpush1.msra.mxu0 0.0
        %256 = vmatprep.subr.mxu0 0.0
        %257 = vmatpush1.msra.mxu0 0.0
        %258 = vmatprep.subr.mxu0 0.0
        %259 = vmatpush1.msra.mxu0 0.0
        %260 = vmatprep.subr.mxu0 0.0
        %261 = vmatpush1.msra.mxu0 0.0
        %262 = vmatprep.subr.mxu0 0.0
        %263 = vmatpush1.msra.mxu0 0.0
        %264 = vmatprep.subr.mxu0 0.0
        %265 = vmatpush1.msra.mxu0 0.0
        %266 = vmatprep.subr.mxu0 0.0
        %267 = vmatpush1.msra.mxu0 0.0
        %268 = vmatprep.subr.mxu0 0.0
        %269 = vmatpush1.msra.mxu0 0.0
        %270 = vmatprep.subr.mxu0 0.0
        %271 = vmatpush1.msra.mxu0 0.0
        %272 = vmatprep.subr.mxu0 0.0
        %273 = vmatpush1.msra.mxu0 0.0
        %274 = vmatprep.subr.mxu0 0.0
        %275 = vmatpush1.msra.mxu0 0.0
        %276 = vmatprep.mubr.f32.mxu0 0.0
        %277 = vmatmul.mubr.f32.gmra.mrb[0].mxu0 %v165
        %v278 = vpop.f32.mrb[0].mxu0
        %v279 = vadd.f32 0.0, %v278
        %v280 = vpop.f32.mrb[0].mxu0
        %281 = vmatprep.mubr.f32.mxu0 0.0
        %282 = vmatmul.mubr.f32.gmra.mrb[0].mxu0 %v168
        %v283 = vpop.f32.mrb[0].mxu0
        %v284 = vadd.f32 0.0, %v283
        %v285 = vpop.f32.mrb[0].mxu0
        %286 = vmatprep.mubr.f32.mxu0 0.0
        %287 = vmatmul.mubr.f32.gmra.mrb[0].mxu0 %v171
        %v288 = vpop.f32.mrb[0].mxu0
        %v289 = vadd.f32 0.0, %v288
        %v290 = vpop.f32.mrb[0].mxu0
        %291 = vmatprep.mubr.f32.mxu0 0.0
        %292 = vmatmul.mubr.f32.gmra.mrb[0].mxu0 %v174
        %v293 = vpop.f32.mrb[0].mxu0
        %v294 = vadd.f32 0.0, %v293
        %v295 = vpop.f32.mrb[0].mxu0
        %296 = vmatprep.mubr.f32.mxu0 0.0
        %297 = vmatmul.mubr.f32.gmra.mrb[0].mxu0 %v177
        %v298 = vpop.f32.mrb[0].mxu0
        %v299 = vadd.f32 0.0, %v298
        %v300 = vpop.f32.mrb[0].mxu0
        %301 = vmatprep.mubr.f32.mxu0 0.0
        %302 = vmatmul.mubr.f32.gmra.mrb[0].mxu0 %v180
        %v303 = vpop.f32.mrb[0].mxu0
        %v304 = vadd.f32 0.0, %v303
        %v305 = vpop.f32.mrb[0].mxu0
        %306 = vmatprep.mubr.f32.mxu0 0.0
        %307 = vmatmul.mubr.f32.gmra.mrb[0].mxu0 %v183
        %v308 = vpop.f32.mrb[0].mxu0
        %v309 = vadd.f32 0.0, %v308
        %v310 = vpop.f32.mrb[0].mxu0
        %311 = vmatprep.mubr.f32.mxu0 0.0
        %312 = vmatmul.mubr.f32.gmra.mrb[0].mxu0 %v186
        %v313 = vpop.f32.mrb[0].mxu0
        %v314 = vadd.f32 0.0, %v313
        %v315 = vpop.f32.mrb[0].mxu0
        %316 = vmatprep.mubr.f32.mxu0 0.0
        %317 = vmatmul.mubr.f32.gmra.mrb[0].mxu0 %v189
        %v318 = vpop.f32.mrb[0].mxu0
        %v319 = vadd.f32 0.0, %v318
        %v320 = vpop.f32.mrb[0].mxu0
        %321 = vmatprep.mubr.f32.mxu0 0.0
        %322 = vmatmul.mubr.f32.gmra.mrb[0].mxu0 %v192
        %v323 = vpop.f32.mrb[0].mxu0
        %v324 = vadd.f32 0.0, %v323
        %v325 = vpop.f32.mrb[0].mxu0
        %326 = vmatprep.mubr.f32.mxu0 0.0
        %327 = vmatmul.mubr.f32.gmra.mrb[0].mxu0 %v195
        %v328 = vpop.f32.mrb[0].mxu0
        %v329 = vadd.f32 0.0, %v328
        %v330 = vpop.f32.mrb[0].mxu0
        %331 = vmatprep.mubr.f32.mxu0 0.0
        %332 = vmatmul.mubr.f32.gmra.mrb[0].mxu0 %v198
        %v333 = vpop.f32.mrb[0].mxu0
        %v334 = vadd.f32 0.0, %v333
        %v335 = vpop.f32.mrb[0].mxu0
        %336 = vmatprep.mubr.f32.mxu0 0.0
        %337 = vmatmul.mubr.f32.gmra.mrb[0].mxu0 %v201
        %v338 = vpop.f32.mrb[0].mxu0
        %v339 = vadd.f32 0.0, %v338
        %v340 = vpop.f32.mrb[0].mxu0
        %341 = vmatprep.mubr.f32.mxu0 0.0
        %342 = vmatmul.mubr.f32.gmra.mrb[0].mxu0 %v204
        %v343 = vpop.f32.mrb[0].mxu0
        %v344 = vadd.f32 0.0, %v343
        %v345 = vpop.f32.mrb[0].mxu0
        %346 = vmatprep.mubr.f32.mxu0 0.0
        %347 = vmatmul.mubr.f32.gmra.mrb[0].mxu0 %v207
        %v348 = vpop.f32.mrb[0].mxu0
        %v349 = vadd.f32 0.0, %v348
        %v350 = vpop.f32.mrb[0].mxu0
        %351 = vmatprep.mubr.f32.mxu0 0.0
        %352 = vmatmul.mubr.f32.gmra.mrb[0].mxu0 %v210
        %v353 = vpop.f32.mrb[0].mxu0
        %v354 = vadd.f32 0.0, %v353
        %v355 = vpop.f32.mrb[0].mxu0
        %356 = vdwg.mxu0
        %v357 = vpack.c.bf16 %v284, %v279
        %v358 = vpack.c.bf16 %v294, %v289
        %v359 = vpack.c.bf16 %v304, %v299
        %v360 = vpack.c.bf16 %v314, %v309
        %v361 = vpack.c.bf16 %v324, %v319
        %v362 = vpack.c.bf16 %v334, %v329
        %v363 = vpack.c.bf16 %v344, %v339
        %v364 = vpack.c.bf16 %v354, %v349
        %v373 = vunpack.c.l.b16 %v357
        %v374 = vunpack.c.h.b16 %v357
        %v375 = vunpack.c.l.b16 %v358
        %v376 = vunpack.c.h.b16 %v358
        %v377 = vunpack.c.l.b16 %v359
        %v378 = vunpack.c.h.b16 %v359
        %v379 = vunpack.c.l.b16 %v360
        %v380 = vunpack.c.h.b16 %v360
        %v381 = vunpack.c.l.b16 %v361
        %v382 = vunpack.c.h.b16 %v361
        %v383 = vunpack.c.l.b16 %v362
        %v384 = vunpack.c.h.b16 %v362
        %v385 = vunpack.c.l.b16 %v363
        %v386 = vunpack.c.h.b16 %v363
        %v387 = vunpack.c.l.b16 %v364
        %v388 = vunpack.c.h.b16 %v364
        %v389 = vpack.c.b16 %v373, %v373
        %v390 = vpack.c.b16 %v374, %v374
        %v391 = vpack.c.b16 %v375, %v375
        %v392 = vpack.c.b16 %v376, %v376
        %v393 = vpack.c.b16 %v377, %v377
        %v394 = vpack.c.b16 %v378, %v378
        %v395 = vpack.c.b16 %v379, %v379
        %v396 = vpack.c.b16 %v380, %v380
        %v397 = vpack.c.b16 %v381, %v381
        %v398 = vpack.c.b16 %v382, %v382
        %v399 = vpack.c.b16 %v383, %v383
        %v400 = vpack.c.b16 %v384, %v384
        %v401 = vpack.c.b16 %v385, %v385
        %v402 = vpack.c.b16 %v386, %v386
        %v403 = vpack.c.b16 %v387, %v387
        %v404 = vpack.c.b16 %v388, %v388
        %421 = vst [vmem:[%s137] sm:$0xf] %v389
        %422 = vst [vmem:[%s137 + $0x4] sm:$0xf] %v390
        %423 = vst [vmem:[%s137 + $0x8] sm:$0xf] %v391
        %424 = vst [vmem:[%s137 + $0xc] sm:$0xf] %v392
        %425 = vst [vmem:[%s137 + $0x10] sm:$0xf] %v393
        %426 = vst [vmem:[%s137 + $0x14] sm:$0xf] %v394
        %427 = vst [vmem:[%s137 + $0x18] sm:$0xf] %v395
        %428 = vst [vmem:[%s137 + $0x1c] sm:$0xf] %v396
        %429 = vst [vmem:[%s137 + $0x20] sm:$0xf] %v397
        %430 = vst [vmem:[%s137 + $0x24] sm:$0xf] %v398
        %431 = vst [vmem:[%s137 + $0x28] sm:$0xf] %v399
        %432 = vst [vmem:[%s137 + $0x2c] sm:$0xf] %v400
        %433 = vst [vmem:[%s137 + $0x30] sm:$0xf] %v401
        %434 = vst [vmem:[%s137 + $0x34] sm:$0xf] %v402
        %435 = vst [vmem:[%s137 + $0x38] sm:$0xf] %v403
        %436 = vst [vmem:[%s137 + $0x3c] sm:$0xf] %v404
        %s437 = sand.u32 %s71, 1
        %s438 = scalar_lea.sflag [#allocation3], %s437
        %s439 = sand.u32 %s71, 1
        %s440 = smul.addr %s439, 64
        %s441 = scalar_lea.vmem [#allocation2], %s440
        // Predicated region
        $region29: #{tpu_custom_call.1} parent=27 // pred_check
          %p442 = pneg %p81
        $region30: #{tpu_custom_call.1} parent=27 // pred_check_branch
          %444 = sbr.rel (%p442) target = $region32
        $region31: #{tpu_custom_call.1} parent=27 // pred_region
          %s445 = smul.u32 16, %s16
          %s447 = ssub.s32 1024, 1024
          %448 = vsyncadd %s438, %s447
          %s449 = smul.addr %s445, 64
          %s450 = scalar_lea.hbm %s2, %s449
          %s451 = sshll.u32 %s441, 4
          %s452 = int_to_ptr.vmem [resolvable:$true] %s451
          %457 = dma.vmem_to_hbm [thread:$0]  %s452, 1024, %s450, %s438, 64, 64, 4
        $region32: #{tpu_custom_call.1} parent=27 // pred_fallthru
          _
      $region28: #{tpu_custom_call.1} parent=5 // pred_fallthru
        _
      %p458 = scmp.le.s32.totalorder 2, %s11
      // Predicated region
      $region33: #{tpu_custom_call.1} parent=5 // pred_check
        %p459 = pneg %p458
      $region34: #{tpu_custom_call.1} parent=5 // pred_check_branch
        %461 = sbr.rel (%p459) target = $region36
      $region35: #{tpu_custom_call.1} parent=5 // pred_region
        %s462 = ssub.s32 %s11, 2
        // Predicated region
        $region37: #{tpu_custom_call.1} parent=35 // pred_check
          %p463 = pneg %p87
        $region38: #{tpu_custom_call.1} parent=35 // pred_check_branch
          %465 = sbr.rel (%p463) target = $region40
        $region39: #{tpu_custom_call.1} parent=35 // pred_region
          %s466 = sand.u32 %s72, 1
          %s467 = scalar_lea.sflag [#allocation3], %s466
          %s468 = sand.u32 %s72, 1
          %s469 = smul.addr %s468, 64
          %s470 = scalar_lea.vmem [#allocation2], %s469
          %471 = dma.done %s467, 1024
        $region40: #{tpu_custom_call.1} parent=35 // pred_fallthru
          _
      $region36: #{tpu_custom_call.1} parent=5 // pred_fallthru
        _
    $region6: #{tpu_custom_call.1} parent=1 // loop_footer
      %s15 = sadd.s32 1, %s11
    $region7: #{tpu_custom_call.1} parent=1 // loop_footer_branch
      %10 = sbr.rel target = $region3
    $region8: #{tpu_custom_call.1} parent=1 // loop_exit
      _
    %472 = vsyncpa [#allocation3], 1
    %s473 = scalar_lea.sflag [#allocation3], 1
    %474 = vsyncpa %s473, 1

</llo_original>
